<compile_context>
chip_gen: v7x
topology: tpu7x:2x2x1
jax: 0.10.0
libtpu: 0.0.40
codegen_flags: <defaults>
</compile_context>

<pallas_src>
import math
import functools

import jax
import jax.numpy as jnp
from jax import lax
from jax.experimental import pallas as pl
from jax.experimental.pallas import tpu as pltpu


# --------------------------------------------------------------------------
# Hardware-generation helpers
# --------------------------------------------------------------------------
def _tpu_kind():
    try:
        return getattr(jax.devices()[0], "device_kind", "").lower()
    except Exception:
        return ""


def _vmem_limit_bytes(kind):
    if "v7" in kind:
        return 48 * 1024 * 1024          # v7x: 64 MiB physical per TC
    if "v4" in kind or "v5" in kind or "v6" in kind:
        return 96 * 1024 * 1024          # 128 MiB physical
    return 48 * 1024 * 1024              # unknown: be conservative


def _default_bf16_exp(kind):
    # bf16 EUP only on v6e / v7x; older chips gain nothing from the extra casts.
    return not any(g in kind for g in ("v2", "v3", "v4", "v5"))


def _pick_block(dim, target, step):
    """Largest multiple of `step` that divides `dim` and is <= target, else dim."""
    if dim <= target:
        return dim
    t = (target // step) * step
    while t >= step:
        if dim % t == 0:
            return t
        t -= step
    return dim


# --------------------------------------------------------------------------
# Projection kernel: y = x @ w, tiled over (rows, Dout, Din) with f32 acc
# --------------------------------------------------------------------------
def _proj_kernel(x_ref, w_ref, o_ref, acc_ref):
    @pl.when(pl.program_id(2) == 0)
    def _init():
        acc_ref[...] = jnp.zeros_like(acc_ref)

    acc_ref[...] += jnp.dot(x_ref[...], w_ref[...],
                            preferred_element_type=jnp.float32)

    @pl.when(pl.program_id(2) == pl.num_programs(2) - 1)
    def _finalize():
        o_ref[...] = acc_ref[...].astype(o_ref.dtype)


def _proj(x, w, *, out_dtype, vmem_limit):
    """x: (M, Din) bf16, w: (Din, Dout) bf16 -> (M, Dout) out_dtype."""
    M, Din = x.shape
    Dout = w.shape[-1]
    bm = _pick_block(M, 512, 8)       # row block (B*S flattened)
    bn = _pick_block(Dout, 512, 128)  # output-feature block
    bk = _pick_block(Din, 1024, 128)  # contraction block (streamed weight)
    grid = (M // bm, Dout // bn, Din // bk)

    x_spec = pl.BlockSpec((bm, bk), lambda m, n, k: (m, k))
    w_spec = pl.BlockSpec((bk, bn), lambda m, n, k: (k, n))
    o_spec = pl.BlockSpec((bm, bn), lambda m, n, k: (m, n))

    return pl.pallas_call(
        _proj_kernel,
        out_shape=jax.ShapeDtypeStruct((M, Dout), out_dtype),
        grid_spec=pltpu.PrefetchScalarGridSpec(
            num_scalar_prefetch=0,
            grid=grid,
            in_specs=[x_spec, w_spec],
            out_specs=o_spec,
            scratch_shapes=[pltpu.VMEM((bm, bn), jnp.float32)],
        ),
        compiler_params=pltpu.CompilerParams(
            dimension_semantics=("parallel", "parallel", "arbitrary"),
            vmem_limit_bytes=vmem_limit,
        ),
    )(x, w)


# --------------------------------------------------------------------------
# Flash attention kernel (online softmax).  Shared by both grid layouts:
#   fused path : grid = (B, H, Sq-tiles, Sk-tiles), head folded into BlockSpecs
#   split path : grid = (B*H, Sq-tiles, Sk-tiles), heads pre-split in XLA
# All refs are 2-D thanks to pl.Squeezed() leading block dims.
# --------------------------------------------------------------------------
def _flash_kernel(q_ref, k_ref, v_ref, o_ref, m_sc, l_sc, acc_sc,
                  *, use_bf16_exp, kv_axis):
    ki = pl.program_id(kv_axis)

    @pl.when(ki == 0)
    def _init():
        m_sc[...] = jnp.full_like(m_sc, -jnp.inf)
        l_sc[...] = jnp.zeros_like(l_sc)
        acc_sc[...] = jnp.zeros_like(acc_sc)

    q = q_ref[...]   # (tq, dk) bf16, 1/sqrt(dk) pre-folded into wq
    k = k_ref[...]   # (tk, dk) bf16
    v = v_ref[...]   # (tk, dk) bf16

    # QK^T without materializing a transposed K: contract dk of both operands.
    s = lax.dot_general(q, k, dimension_numbers=(((1,), (1,)), ((), ())),
                        preferred_element_type=jnp.float32)      # (tq, tk) f32
    # TODO(synk): optional attention mask (mask == 0 -> -1000.0) not wired in;
    # the PyTorch default call uses mask=None.

    m_prev = m_sc[...]                                            # (tq, 1)
    m_new = jnp.maximum(m_prev, jnp.max(s, axis=-1, keepdims=True))
    alpha = jnp.exp(m_prev - m_new)                               # (tq, 1) f32

    if use_bf16_exp:
        # v6e/v7x: bf16 EUP doubles throughput on the saturating slot.
        p_bf16 = jnp.exp((s - m_new).astype(jnp.bfloat16))
        p_f32 = p_bf16.astype(jnp.float32)
    else:
        p_f32 = jnp.exp(s - m_new)
        p_bf16 = p_f32.astype(jnp.bfloat16)

    l_sc[...] = alpha * l_sc[...] + jnp.sum(p_f32, axis=-1, keepdims=True)
    acc_sc[...] = alpha * acc_sc[...] + jnp.dot(
        p_bf16, v, preferred_element_type=jnp.float32)
    m_sc[...] = m_new

    # (dropout on the attention probs is identity at inference)

    @pl.when(ki == pl.num_programs(kv_axis) - 1)
    def _finalize():
        # Exact divide: runs once per q-tile, recovers precision lost to bf16 exp.
        o_ref[...] = (acc_sc[...] / l_sc[...]).astype(o_ref.dtype)


def _flash_scratch(tq, dk):
    return [
        pltpu.VMEM((tq, 1), jnp.float32),    # running max m
        pltpu.VMEM((tq, 1), jnp.float32),    # running denom l
        pltpu.VMEM((tq, dk), jnp.float32),   # output accumulator
    ]


def _flash_attention_fused(Q, K, V, *, num_heads, tq, tk, use_bf16_exp,
                           vmem_limit):
    """Q, K, V: (B, S, D) bf16 (Q pre-scaled).  Head index folded into the
    BlockSpecs; output written directly as (B, S, D).  Requires d_k % 128 == 0
    or d_k == D."""
    B, S, D = Q.shape
    dk = D // num_heads
    grid = (B, num_heads, S // tq, S // tk)

    q_spec = pl.BlockSpec((pl.Squeezed(), tq, dk), lambda b, h, qi, ki: (b, qi, h))
    k_spec = pl.BlockSpec((pl.Squeezed(), tk, dk), lambda b, h, qi, ki: (b, ki, h))
    v_spec = pl.BlockSpec((pl.Squeezed(), tk, dk), lambda b, h, qi, ki: (b, ki, h))
    o_spec = pl.BlockSpec((pl.Squeezed(), tq, dk), lambda b, h, qi, ki: (b, qi, h))
    # TODO(synk): on v5e (0.8 TB/s HBM) add pipeline_mode=pl.Buffered(3) to the
    # K/V specs to hide exposed DMA under the slower MXU.

    kernel = functools.partial(_flash_kernel, use_bf16_exp=use_bf16_exp,
                               kv_axis=3)
    return pl.pallas_call(
        kernel,
        out_shape=jax.ShapeDtypeStruct((B, S, D), Q.dtype),
        grid_spec=pltpu.PrefetchScalarGridSpec(
            num_scalar_prefetch=0,
            grid=grid,
            in_specs=[q_spec, k_spec, v_spec],
            out_specs=o_spec,
            scratch_shapes=_flash_scratch(tq, dk),
        ),
        compiler_params=pltpu.CompilerParams(
            dimension_semantics=("parallel", "parallel", "parallel", "arbitrary"),
            vmem_limit_bytes=vmem_limit,
        ),
    )(Q, K, V)


def _flash_attention_split(Q, K, V, *, tq, tk, use_bf16_exp, vmem_limit):
    """Fallback for small d_k.  Q, K, V: (B*H, S, dk) bf16 (Q pre-scaled)."""
    BH, S, dk = Q.shape
    grid = (BH, S // tq, S // tk)

    q_spec = pl.BlockSpec((pl.Squeezed(), tq, dk), lambda b, qi, ki: (b, qi, 0))
    kv_spec = pl.BlockSpec((pl.Squeezed(), tk, dk), lambda b, qi, ki: (b, ki, 0))
    o_spec = pl.BlockSpec((pl.Squeezed(), tq, dk), lambda b, qi, ki: (b, qi, 0))

    kernel = functools.partial(_flash_kernel, use_bf16_exp=use_bf16_exp,
                               kv_axis=2)
    return pl.pallas_call(
        kernel,
        out_shape=jax.ShapeDtypeStruct((BH, S, dk), Q.dtype),
        grid_spec=pltpu.PrefetchScalarGridSpec(
            num_scalar_prefetch=0,
            grid=grid,
            in_specs=[q_spec, kv_spec, kv_spec],
            out_specs=o_spec,
            scratch_shapes=_flash_scratch(tq, dk),
        ),
        compiler_params=pltpu.CompilerParams(
            dimension_semantics=("parallel", "parallel", "arbitrary"),
            vmem_limit_bytes=vmem_limit,
        ),
    )(Q, K, V)


# --------------------------------------------------------------------------
# Wrappers
# --------------------------------------------------------------------------
def prepare_attention_weights(wq, wk, wv, wo, *, num_heads):
    """One-time weight prep (hoisted out of the per-call hot path):
    fold 1/sqrt(d_k) into wq and cast everything to bf16."""
    D = wq.shape[0]
    dk = D // num_heads
    scale = 1.0 / math.sqrt(dk)
    return (
        (wq * scale).astype(jnp.bfloat16),
        wk.astype(jnp.bfloat16),
        wv.astype(jnp.bfloat16),
        wo.astype(jnp.bfloat16),
    )


def _split_heads(x, B, S, H, dk):
    # (B, S, D) -> (B*H, S, dk)   (fallback path only)
    return x.reshape(B, S, H, dk).transpose(0, 2, 1, 3).reshape(B * H, S, dk)


def _merge_heads(x, B, S, H, dk):
    # (B*H, S, dk) -> (B, S, D)   (fallback path only)
    return x.reshape(B, H, S, dk).transpose(0, 2, 1, 3).reshape(B, S, H * dk)


def attention_pallas(q, k, v, weights, *, num_heads, use_bf16_exp=None):
    """q, k, v: (B, S, D); weights = prepare_attention_weights(...) output."""
    B, S, D = q.shape
    H = num_heads
    dk = D // H
    wq_s, wk_b, wv_b, wo_b = weights

    kind = _tpu_kind()
    vmem_limit = _vmem_limit_bytes(kind)
    if use_bf16_exp is None:
        use_bf16_exp = _default_bf16_exp(kind)

    # Flash tile sizes: MXU-256-aligned at production S, full extent for toy S.
    tq = _pick_block(S, 256, 128)
    tk = _pick_block(S, 512, 128)

    # --- Q/K/V projections (separate calls: no activation stacking traffic;
    #     1/sqrt(d_k) already folded into wq_s; bf16 activations & weights) ---
    M = B * S
    Qp = _proj(q.reshape(M, D).astype(jnp.bfloat16), wq_s,
               out_dtype=jnp.bfloat16, vmem_limit=vmem_limit)
    Kp = _proj(k.reshape(M, D).astype(jnp.bfloat16), wk_b,
               out_dtype=jnp.bfloat16, vmem_limit=vmem_limit)
    Vp = _proj(v.reshape(M, D).astype(jnp.bfloat16), wv_b,
               out_dtype=jnp.bfloat16, vmem_limit=vmem_limit)

    # --- flash attention ---
    if dk % 128 == 0 or dk == D:
        # Head indexing folded into BlockSpecs: no split/merge transposes.
        ctx = _flash_attention_fused(
            Qp.reshape(B, S, D), Kp.reshape(B, S, D), Vp.reshape(B, S, D),
            num_heads=H, tq=tq, tk=tk, use_bf16_exp=use_bf16_exp,
            vmem_limit=vmem_limit)                                # (B, S, D)
        ctx_flat = ctx.reshape(M, D)
    else:
        # Small d_k (< 128): the (8,128) last-dim block constraint forbids the
        # folded layout; fall back to XLA head split/merge.
        Qh = _split_heads(Qp.reshape(B, S, D), B, S, H, dk)
        Kh = _split_heads(Kp.reshape(B, S, D), B, S, H, dk)
        Vh = _split_heads(Vp.reshape(B, S, D), B, S, H, dk)
        ctx = _flash_attention_split(Qh, Kh, Vh, tq=tq, tk=tk,
                                     use_bf16_exp=use_bf16_exp,
                                     vmem_limit=vmem_limit)        # (B*H, S, dk)
        ctx_flat = _merge_heads(ctx, B, S, H, dk).reshape(M, D)

    # --- output projection ---
    out = _proj(ctx_flat.astype(jnp.bfloat16), wo_b,
                out_dtype=q.dtype, vmem_limit=vmem_limit)          # (M, D)
    return out.reshape(B, S, D)


def attention_reference(q, k, v, wq, wk, wv, wo, *, num_heads):
    """Plain-JAX f32 reference mirroring the PyTorch forward (mask=None, eval)."""
    B, S, D = q.shape
    d_k = D // num_heads

    def split(x):  # (B, S, D) -> (B, H, S, d_k)
        return x.reshape(B, S, num_heads, d_k).transpose(0, 2, 1, 3)

    Q = split(q @ wq)
    K = split(k @ wk)
    V = split(v @ wv)
    scores = jnp.einsum('bhqd,bhkd->bhqk', Q, K) / math.sqrt(d_k)
    attn = jax.nn.softmax(scores, axis=-1)
    out = jnp.einsum('bhqk,bhkd->bhqd', attn, V)
    out = out.transpose(0, 2, 1, 3).reshape(B, S, D)
    return out @ wo


# --------------------------------------------------------------------------
# Self-test
# --------------------------------------------------------------------------
if __name__ == "__main__":
    def run_case(B, S, D, H, subkey):
        ks = jax.random.split(subkey, 7)
        q = jax.random.normal(ks[0], (B, S, D), jnp.float32)
        k = jax.random.normal(ks[1], (B, S, D), jnp.float32)
        v = jax.random.normal(ks[2], (B, S, D), jnp.float32)
        bound = 1.0 / math.sqrt(D)   # nn.Linear default init range
        wq = jax.random.uniform(ks[3], (D, D), jnp.float32, -bound, bound)
        wk = jax.random.uniform(ks[4], (D, D), jnp.float32, -bound, bound)
        wv = jax.random.uniform(ks[5], (D, D), jnp.float32, -bound, bound)
        wo = jax.random.uniform(ks[6], (D, D), jnp.float32, -bound, bound)

        weights = prepare_attention_weights(wq, wk, wv, wo, num_heads=H)
        out = attention_pallas(q, k, v, weights, num_heads=H)
        out = jax.block_until_ready(out)

        ref = attention_reference(q, k, v, wq, wk, wv, wo, num_heads=H)
        assert out.shape == (B, S, D)
        err = float(jnp.max(jnp.abs(out - ref)))
        scale = float(jnp.max(jnp.abs(ref)))
        # bf16 MXU path (+ bf16 exp on v6e/v7x) vs f32 reference.
        assert err <= 2e-2 + 2e-2 * scale, \
            f"mismatch B={B} S={S} D={D} H={H}: err={err} scale={scale}"

    key = jax.random.PRNGKey(0)
    k1, k2 = jax.random.split(key)

    # Small shape (d_k = 8): exercises the split-heads fallback flash path.
    run_case(2, 8, 32, 4, k1)
    # d_k = 128 shape: exercises head-folded BlockSpecs + tiled projections.
    run_case(2, 256, 256, 2, k2)

    print("KERNEL_OK")
</pallas_src>

<mosaic_0001>
module attributes {stable_mosaic.version = 11 : i64} {
  func.func @_proj_kernel(%arg0: i32, %arg1: i32, %arg2: i32, %arg3: memref<16x32xbf16, #tpu.memory_space<vmem>>, %arg4: memref<32x32xbf16, #tpu.memory_space<vmem>>, %arg5: memref<16x32xbf16, #tpu.memory_space<vmem>>, %arg6: memref<16x32xf32, #tpu.memory_space<vmem>>) attributes {dimension_semantics = [#tpu.dimension_semantics<parallel>, #tpu.dimension_semantics<parallel>, #tpu.dimension_semantics<arbitrary>], iteration_bounds = array<i64: 1, 1, 1>, scalar_prefetch = 0 : i64, scratch_operands = 1 : i64, tpu.core_type = #tpu.core_type<tc>, window_params = [{transform_indices = @transform_0, window_bounds = array<i64: 16, 32>}, {transform_indices = @transform_1, window_bounds = array<i64: 32, 32>}, {transform_indices = @transform_2, window_bounds = array<i64: 16, 32>}]} {
    %c0_i32 = arith.constant 0 : i32
    %0 = arith.cmpi eq, %arg2, %c0_i32 : i32
    %1 = arith.extui %0 : i1 to i32
    %c0_i32_0 = arith.constant 0 : i32
    %2 = arith.cmpi ne, %1, %c0_i32_0 : i32
    scf.if %2 {
      %cst_10 = arith.constant 0.000000e+00 : f32
      %12 = vector.broadcast %cst_10 : f32 to vector<16x32xf32>
      %c0_11 = arith.constant 0 : index
      %c0_12 = arith.constant 0 : index
      %13 = vector.load %arg6[%c0_11, %c0_12] : memref<16x32xf32, #tpu.memory_space<vmem>>, vector<16x32xf32>
      tpu.vector_store %arg6[%c0_11, %c0_12], %12 {strides = array<i32>} : memref<16x32xf32, #tpu.memory_space<vmem>>, vector<16x32xf32>,
    } else {
    }
    %c0 = arith.constant 0 : index
    %c0_1 = arith.constant 0 : index
    %3 = vector.load %arg6[%c0, %c0_1] : memref<16x32xf32, #tpu.memory_space<vmem>>, vector<16x32xf32>
    %c0_2 = arith.constant 0 : index
    %c0_3 = arith.constant 0 : index
    %4 = vector.load %arg3[%c0_2, %c0_3] : memref<16x32xbf16, #tpu.memory_space<vmem>>, vector<16x32xbf16>
    %c0_4 = arith.constant 0 : index
    %c0_5 = arith.constant 0 : index
    %5 = vector.load %arg4[%c0_4, %c0_5] : memref<32x32xbf16, #tpu.memory_space<vmem>>, vector<32x32xbf16>
    %cst = arith.constant dense<0.000000e+00> : vector<16x32xf32>
    %6 = tpu.matmul %4, %5, %cst {dimension_numbers = #tpu.dot_dimension_numbers<[1], [0], [0], [1], [0, 0, 1, 1], [], []>} : vector<16x32xbf16>, vector<32x32xbf16>, vector<16x32xf32> -> vector<16x32xf32>
    %7 = arith.addf %3, %6 : vector<16x32xf32>
    %c0_6 = arith.constant 0 : index
    %c0_7 = arith.constant 0 : index
    %8 = vector.load %arg6[%c0_6, %c0_7] : memref<16x32xf32, #tpu.memory_space<vmem>>, vector<16x32xf32>
    tpu.vector_store %arg6[%c0_6, %c0_7], %7 {strides = array<i32>} : memref<16x32xf32, #tpu.memory_space<vmem>>, vector<16x32xf32>,
    %c0_i32_8 = arith.constant 0 : i32
    %9 = arith.cmpi eq, %arg2, %c0_i32_8 : i32
    %10 = arith.extui %9 : i1 to i32
    %c0_i32_9 = arith.constant 0 : i32
    %11 = arith.cmpi ne, %10, %c0_i32_9 : i32
    scf.if %11 {
      %c0_10 = arith.constant 0 : index
      %c0_11 = arith.constant 0 : index
      %12 = vector.load %arg6[%c0_10, %c0_11] : memref<16x32xf32, #tpu.memory_space<vmem>>, vector<16x32xf32>
      %13 = arith.truncf %12 : vector<16x32xf32> to vector<16x32xbf16>
      %c0_12 = arith.constant 0 : index
      %c0_13 = arith.constant 0 : index
      %14 = vector.load %arg5[%c0_12, %c0_13] : memref<16x32xbf16, #tpu.memory_space<vmem>>, vector<16x32xbf16>
      tpu.vector_store %arg5[%c0_12, %c0_13], %13 {strides = array<i32>} : memref<16x32xbf16, #tpu.memory_space<vmem>>, vector<16x32xbf16>,
    } else {
    }
    return
  }
  func.func @transform_0(%arg0: i32, %arg1: i32, %arg2: i32) -> (i32, i32) {
    %c0_i32 = arith.constant 0 : i32
    return %arg0, %arg2 : i32, i32
  }
  func.func @transform_1(%arg0: i32, %arg1: i32, %arg2: i32) -> (i32, i32) {
    %c0_i32 = arith.constant 0 : i32
    return %arg2, %arg1 : i32, i32
  }
  func.func @transform_2(%arg0: i32, %arg1: i32, %arg2: i32) -> (i32, i32) {
    %c0_i32 = arith.constant 0 : i32
    return %arg0, %arg1 : i32, i32
  }
}

</mosaic_0001>

<llo_original>
// kernel: tpu_custom_call.1
$region0: #{tpu_custom_call.1}
  #allocation0 [shape = 'u32[]', space=smem, size = 0x4, offset = 0x4, fixed_abs, tag = 'smem constant byte address 0x4 - core index']
  #allocation1 [shape = 'u32[144,128]{1,0:T(1,128)}', space=vmem, size = 0x12000, scoped, tag = 'internal scratch']
  #allocation2 [shape = 'f32[16,32]{1,0:T(8,128)}', space=vmem, size = 0x2000, scoped, tag = 'scratch operand']
  %s0 = inlined_call_operand.hbm [shape: bf16[16,32], index: 0, kind: input, shape index: {}]
  %s1 = inlined_call_operand.hbm [shape: bf16[32,32], index: 1, kind: input, shape index: {}]
  %s2 = inlined_call_operand.hbm [shape: bf16[16,32], index: 2, kind: output, shape index: {}]
  %s3 = sld [smem:[#allocation0]]
  $region34: #{tpu_custom_call.1} parent=0
    _
  %s5 = ssub.s32 1, %s3
  %s6 = scalar_select 0, %s5, %s3
  $region1: #{tpu_custom_call.1} parent=0
    #allocation3 [shape = 'u8[4096]{0}', space=vmem, size = 0x1000, scoped, tag = 'input window, operand 0, single buffered']
    #allocation4 [shape = 's32[1]{0}', space=sflag, size = 0x4, scoped, tag = 'scoped memory for tpu_custom_call.1']
    #allocation5 [shape = 's32[1]{0}', space=sflag, size = 0x4, scoped, tag = 'scoped memory for tpu_custom_call.1']
    #allocation6 [shape = 'u8[8192]{0}', space=vmem, size = 0x2000, scoped, tag = 'input window, operand 1, single buffered']
    #allocation7 [shape = 's32[1]{0}', space=sflag, size = 0x4, scoped, tag = 'scoped memory for tpu_custom_call.1']
    #allocation8 [shape = 'u8[4096]{0}', space=vmem, size = 0x1000, scoped, tag = 'output window, operand 0, single buffered']
    %7 = vsyncpa [#allocation4], 0
    %8 = vsyncpa [#allocation7], 0
    %9 = vsyncpa [#allocation5], 0
    // Predicated region
    $region2: #{tpu_custom_call.1} parent=1 // pred_check
      _
    $region3: #{tpu_custom_call.1} parent=1 // pred_check_branch
      %11 = sbr.rel (0) target = $region5
    $region4: #{tpu_custom_call.1} parent=1 // pred_region
      %s13 = ssub.s32 128, 128
      %14 = vsyncadd [#allocation4], %s13
      %s15 = sshll.u32 [#allocation3], 4
      %s16 = int_to_ptr.vmem [resolvable:$true] %s15
      %21 = dma.hbm_to_vmem [thread:$0]  %s0, 128, %s16, [#allocation4], 64, 64, 4
    $region5: #{tpu_custom_call.1} parent=1 // pred_fallthru
      _
    // Predicated region
    $region6: #{tpu_custom_call.1} parent=1 // pred_check
      _
    $region7: #{tpu_custom_call.1} parent=1 // pred_check_branch
      %23 = sbr.rel (0) target = $region9
    $region8: #{tpu_custom_call.1} parent=1 // pred_region
      %s25 = ssub.s32 256, 256
      %26 = vsyncadd [#allocation7], %s25
      %s27 = sshll.u32 [#allocation6], 4
      %s28 = int_to_ptr.vmem [resolvable:$true] %s27
      %33 = dma.hbm_to_vmem [thread:$0]  %s1, 256, %s28, [#allocation7], 64, 64, 4
    $region9: #{tpu_custom_call.1} parent=1 // pred_fallthru
      _
    // Predicated region
    $region10: #{tpu_custom_call.1} parent=1 // pred_check
      _
    $region11: #{tpu_custom_call.1} parent=1 // pred_check_branch
      %35 = sbr.rel (0) target = $region13
    $region12: #{tpu_custom_call.1} parent=1 // pred_region
      %36 = dma.done [#allocation4], 128
    $region13: #{tpu_custom_call.1} parent=1 // pred_fallthru
      _
    // Predicated region
    $region14: #{tpu_custom_call.1} parent=1 // pred_check
      _
    $region15: #{tpu_custom_call.1} parent=1 // pred_check_branch
      %38 = sbr.rel (0) target = $region17
    $region16: #{tpu_custom_call.1} parent=1 // pred_region
      %39 = dma.done [#allocation7], 256
    $region17: #{tpu_custom_call.1} parent=1 // pred_fallthru
      _
    %p41 = scmp.eq.s32.totalorder 0, 0
    // Predicated region
    $region18: #{tpu_custom_call.1} parent=1 // pred_check
      %p42 = pneg %p41
    $region19: #{tpu_custom_call.1} parent=1 // pred_check_branch
      %44 = sbr.rel (%p42) target = $region21
    $region20: #{tpu_custom_call.1} parent=1 // pred_region
      %vm45 = vcmask 261120
      %46 = vst.msk [vmem:[#allocation2] sm:$0xff] %vm45, 0.0
      %47 = vst.msk [vmem:[#allocation2 + $0x8] sm:$0xff] %vm45, 0.0
    $region21: #{tpu_custom_call.1} parent=1 // pred_fallthru
      _
    %v48 = vld [vmem:[#allocation2] sm:$0xff]
    %v49 = vld [vmem:[#allocation2 + $0x8] sm:$0xff]
    %v50 = vld [vmem:[#allocation3] sm:$0xf]
    %v51 = vld [vmem:[#allocation3 + $0x4] sm:$0xf]
    %v52 = vld [vmem:[#allocation6] sm:$0xf]
    %v53 = vld [vmem:[#allocation6 + $0x4] sm:$0xf]
    %v54 = vld [vmem:[#allocation6 + $0x8] sm:$0xf]
    %v55 = vld [vmem:[#allocation6 + $0xc] sm:$0xf]
    %v58 = vunpack.c.l.b16 %v50
    %v59 = vunpack.c.l.b16 %v51
    %v60 = vpack.c.b16 %v59, %v58
    %v65 = vunpack.c.l.b16 %v52
    %v66 = vunpack.c.l.b16 %v53
    %v67 = vunpack.c.l.b16 %v54
    %v68 = vunpack.c.l.b16 %v55
    %v69 = vpack.c.b16 %v66, %v65
    %v70 = vpack.c.b16 %v68, %v67
    %vm73 = vcmask 261120
    %v75 = vsel %vm73, %v60, 0
    %77 = vmatprep.subr.bf16.mxu0 0
    %78 = vmatpush1.bf16.msra.mxu0 %v69
    %79 = vmatprep.subr.bf16.mxu0 0
    %80 = vmatpush1.bf16.msra.mxu0 %v70
    %81 = vmatprep.subr.bf16.mxu0 0
    %82 = vmatpush1.bf16.msra.mxu0 0
    %83 = vmatprep.subr.bf16.mxu0 0
    %84 = vmatpush1.bf16.msra.mxu0 0
    %85 = vmatprep.subr.bf16.mxu0 0
    %86 = vmatpush1.bf16.msra.mxu0 0
    %87 = vmatprep.subr.bf16.mxu0 0
    %88 = vmatpush1.bf16.msra.mxu0 0
    %89 = vmatprep.subr.bf16.mxu0 0
    %90 = vmatpush1.bf16.msra.mxu0 0
    %91 = vmatprep.subr.bf16.mxu0 0
    %92 = vmatpush1.bf16.msra.mxu0 0
    %93 = vmatprep.subr.bf16.mxu0 0
    %94 = vmatpush1.bf16.msra.mxu0 0
    %95 = vmatprep.subr.bf16.mxu0 0
    %96 = vmatpush1.bf16.msra.mxu0 0
    %97 = vmatprep.subr.bf16.mxu0 0
    %98 = vmatpush1.bf16.msra.mxu0 0
    %99 = vmatprep.subr.bf16.mxu0 0
    %100 = vmatpush1.bf16.msra.mxu0 0
    %101 = vmatprep.subr.bf16.mxu0 0
    %102 = vmatpush1.bf16.msra.mxu0 0
    %103 = vmatprep.subr.bf16.mxu0 0
    %104 = vmatpush1.bf16.msra.mxu0 0
    %105 = vmatprep.subr.bf16.mxu0 0
    %106 = vmatpush1.bf16.msra.mxu0 0
    %107 = vmatprep.subr.bf16.mxu0 0
    %108 = vmatpush1.bf16.msra.mxu0 0
    %109 = vmatprep.mubr.bf16.mxu0 0
    %110 = vmatmul.mubr.bf16.gmra.mrb[0].mxu0 %v75
    %v111 = vpop.f32.mrb[0].mxu0
    %v112 = vadd.f32 0.0, %v111
    %v113 = vpop.f32.mrb[0].mxu0
    %v114 = vpop.f32.mrb[0].mxu0
    %v115 = vadd.f32 0.0, %v114
    %v116 = vpop.f32.mrb[0].mxu0
    %117 = vdwg.mxu0
    %v118 = vadd.f32 %v48, %v112
    %v119 = vadd.f32 %v49, %v115
    %120 = vst.msk [vmem:[#allocation2] sm:$0xff] %vm73, %v118
    %121 = vst.msk [vmem:[#allocation2 + $0x8] sm:$0xff] %vm73, %v119
    // Predicated region
    $region22: #{tpu_custom_call.1} parent=1 // pred_check
      %p122 = pneg %p41
    $region23: #{tpu_custom_call.1} parent=1 // pred_check_branch
      %124 = sbr.rel (%p122) target = $region25
    $region24: #{tpu_custom_call.1} parent=1 // pred_region
      %v125 = vld [vmem:[#allocation2] sm:$0xff]
      %v126 = vld [vmem:[#allocation2 + $0x8] sm:$0xff]
      %v127 = vpack.c.bf16 %v126, %v125
      %v129 = vunpack.c.l.b16 %v127
      %v130 = vunpack.c.h.b16 %v127
      %v131 = vpack.c.b16 %v129, %v129
      %v132 = vpack.c.b16 %v130, %v130
      %vm135 = vcmask 257024
      %136 = vst.msk [vmem:[#allocation8] sm:$0xf] %vm135, %v131
      %137 = vst.msk [vmem:[#allocation8 + $0x4] sm:$0xf] %vm135, %v132
    $region25: #{tpu_custom_call.1} parent=1 // pred_fallthru
      _
    // Predicated region
    $region26: #{tpu_custom_call.1} parent=1 // pred_check
      _
    $region27: #{tpu_custom_call.1} parent=1 // pred_check_branch
      %139 = sbr.rel (0) target = $region29
    $region28: #{tpu_custom_call.1} parent=1 // pred_region
      %s141 = ssub.s32 128, 128
      %142 = vsyncadd [#allocation5], %s141
      %s143 = sshll.u32 [#allocation8], 4
      %s144 = int_to_ptr.vmem [resolvable:$true] %s143
      %149 = dma.vmem_to_hbm [thread:$0]  %s144, 128, %s2, [#allocation5], 64, 64, 4
    $region29: #{tpu_custom_call.1} parent=1 // pred_fallthru
      _
    // Predicated region
    $region30: #{tpu_custom_call.1} parent=1 // pred_check
      _
    $region31: #{tpu_custom_call.1} parent=1 // pred_check_branch
      %151 = sbr.rel (0) target = $region33
    $region32: #{tpu_custom_call.1} parent=1 // pred_region
      %152 = dma.done [#allocation5], 128
    $region33: #{tpu_custom_call.1} parent=1 // pred_fallthru
      _
    %153 = vsyncpa [#allocation4], 1
    %154 = vsyncpa [#allocation7], 1
    %155 = vsyncpa [#allocation5], 1

</llo_original>
